<compile_context>
chip_gen: v7x
topology: tpu7x:2x2x1
jax: 0.10.0
libtpu: 0.0.40
codegen_flags: <defaults>
</compile_context>

<pallas_src>
import jax
import jax.numpy as jnp
from jax.experimental import pallas as pl
from jax.experimental.pallas import tpu as pltpu


def _h_swish_ref(x):
    """Pure-JAX reference: x * relu6(x + 3) / 6."""
    return x * (jnp.clip(x + 3.0, 0.0, 6.0) / 6.0)


def _h_swish_kernel(x_ref, o_ref):
    x = x_ref[...]
    # 8-bit float inputs: do the arithmetic in f32 (free; kernel is HBM-bound),
    # cast back on the store.
    if x.dtype.itemsize == 1:
        x = x.astype(jnp.float32)
    # Multiply by 1/6 instead of dividing (keeps it a single VALU multiply).
    y = x * (jnp.clip(x + 3.0, 0.0, 6.0) * (1.0 / 6.0))
    o_ref[...] = y.astype(o_ref.dtype)


# Sublane packing per element width: f32 -> 8 rows/vreg, bf16/f16 -> 16, fp8 -> 32.
_SUBLANE = {4: 8, 2: 16, 1: 32}

# Below this size, launching a Pallas kernel costs more than it saves.
_SMALL_FALLBACK_BYTES = 1 << 20


def _hw_params():
    """(tile_bytes, vmem_limit_bytes, min_grid_steps) per TPU generation."""
    kind = ""
    try:
        kind = jax.devices()[0].device_kind.lower()
    except Exception:
        pass
    if "v7" in kind:
        # 64 MiB physical VMEM per TC, 2 TCs/chip: cap blocks (~6 MiB * 4 live
        # buffers = 24 MiB <= 32 MiB scoped) and make mid/large tensors produce
        # multiple grid steps so megacore can shard the "parallel" axis.
        return 6 << 20, 32 << 20, 8
    if "v6" in kind:
        # 128 MiB VMEM: larger blocks amortize the per-grid-step overhead.
        return 8 << 20, 64 << 20, 1
    if "v5e" in kind or "v5 lite" in kind or "v5lite" in kind:
        # Scoped default is 16 MiB; the raised limit is load-bearing here.
        return 4 << 20, 32 << 20, 1
    # Unknown / older generation: conservative settings that are safe everywhere.
    return 4 << 20, 32 << 20, 1


def h_swish(x: jax.Array, *, force_pallas: bool = False) -> jax.Array:
    """Elementwise h_swish = x * relu6(x + 3) / 6.  Any shape, float dtype."""
    orig_shape = x.shape
    dtype = x.dtype
    total = x.size
    if total == 0:
        return x
    if not jnp.issubdtype(dtype, jnp.floating):
        raise TypeError(f"h_swish expects a floating dtype, got {dtype}")

    itemsize = dtype.itemsize
    if itemsize not in _SUBLANE:          # e.g. float64: no TPU fast path
        return _h_swish_ref(x)
    sublane = _SUBLANE[itemsize]

    # Small-tensor fall-through: fused XLA elementwise already hits roofline and
    # avoids the pallas_call launch / pipeline prologue overhead.
    if not force_pallas and total * itemsize < _SMALL_FALLBACK_BYTES:
        return _h_swish_ref(x)

    tile_bytes, vmem_limit, min_steps = _hw_params()

    # --- lane-dense 2D view (rows, cols), cols a multiple of 128 -------------
    # No pad needed whenever total % 128 == 0: the (8,128) constraint applies to
    # the block shape, and Pallas masks ragged edge row-blocks.
    cols = None
    for c in (1024, 512, 256, 128):
        if total % c == 0:
            cols = c
            break

    if cols is not None:
        rows = total // cols
        x2d = x.reshape(rows, cols)       # metadata-only on contiguous data
        pad = 0
    else:
        # Rare: size not a multiple of 128. Pad only up to the next 128 lanes.
        # TODO(synk): a masked-tail store on the last block would remove the
        # pad + final slice HBM round trips; every realistic MobileNetV3
        # activation hits either the no-pad path or the small fall-through.
        cols = 128
        padded_total = pl.cdiv(total, cols) * cols
        pad = padded_total - total
        rows = padded_total // cols
        x2d = jnp.pad(x.reshape(-1), (0, pad)).reshape(rows, cols)

    # --- block sizing ---------------------------------------------------------
    target_rows = max(sublane, tile_bytes // (cols * itemsize))
    target_rows = max(sublane, (target_rows // sublane) * sublane)

    if min_steps > 1:
        # v7x: guarantee enough grid steps for both TensorCores on mid/large
        # tensors (grid of 1 pins all work to one TC).
        tbytes = total * itemsize
        want = min_steps if tbytes >= (8 << 20) else (2 if tbytes >= (2 << 20) else 1)
        if want > 1:
            cap = pl.cdiv(pl.cdiv(rows, want), sublane) * sublane
            target_rows = max(sublane, min(target_rows, cap))

    # block_rows is either a multiple of `sublane` or equals the full row count.
    block_rows = min(rows, target_rows)
    grid = (pl.cdiv(rows, block_rows),)

    out2d = pl.pallas_call(
        _h_swish_kernel,
        out_shape=jax.ShapeDtypeStruct((rows, cols), dtype),
        grid_spec=pltpu.PrefetchScalarGridSpec(
            num_scalar_prefetch=0,
            grid=grid,
            in_specs=[pl.BlockSpec((block_rows, cols), lambda i: (i, 0))],
            out_specs=pl.BlockSpec((block_rows, cols), lambda i: (i, 0)),
        ),
        compiler_params=pltpu.CompilerParams(
            dimension_semantics=("parallel",),
            vmem_limit_bytes=vmem_limit,
        ),
        cost_estimate=pl.CostEstimate(
            flops=5 * total,
            transcendentals=0,
            bytes_accessed=2 * rows * cols * itemsize,
        ),
    )(x2d)

    if pad:
        return out2d.reshape(-1)[:total].reshape(orig_shape)
    return out2d.reshape(orig_shape)


if __name__ == "__main__":
    key = jax.random.PRNGKey(0)

    # Primary spec-consistent input: NCHW f32, batch=2, channels=4, spatial=16.
    x = jax.random.normal(key, (2, 4, 16, 16), dtype=jnp.float32) * 4.0
    y_ref = _h_swish_ref(x)

    # (a) default path: small input takes the fused-XLA fall-through.
    y_small = jax.block_until_ready(h_swish(x))
    assert y_small.shape == x.shape and y_small.dtype == x.dtype
    assert jnp.allclose(y_small, y_ref, atol=1e-6, rtol=1e-6), "small-path mismatch"

    # (b) force the Pallas kernel on the same input (exercises the fast path).
    y_pal = jax.block_until_ready(h_swish(x, force_pallas=True))
    assert y_pal.shape == x.shape and y_pal.dtype == x.dtype
    assert jnp.allclose(y_pal, y_ref, atol=1e-6, rtol=1e-6), "f32 Pallas mismatch"

    # bf16 (common MobileNetV3 activation dtype) through the Pallas kernel.
    xb = x.astype(jnp.bfloat16)
    yb = jax.block_until_ready(h_swish(xb, force_pallas=True))
    assert yb.dtype == jnp.bfloat16 and yb.shape == xb.shape
    assert jnp.allclose(yb.astype(jnp.float32),
                        _h_swish_ref(xb).astype(jnp.float32),
                        atol=1e-2, rtol=1e-2), "bf16 Pallas mismatch"

    # Medium tensor (>= 1 MiB): takes the default Pallas path.
    xm = jax.random.normal(jax.random.PRNGKey(1), (2, 32, 64, 64), dtype=jnp.float32)
    ym = jax.block_until_ready(h_swish(xm))
    assert jnp.allclose(ym, _h_swish_ref(xm), atol=1e-6, rtol=1e-6), "medium mismatch"

    # Ragged size (numel not a multiple of 128): exercises the pad fallback.
    xr = jax.random.normal(jax.random.PRNGKey(2), (3, 5, 7), dtype=jnp.float32)
    yr = jax.block_until_ready(h_swish(xr, force_pallas=True))
    assert jnp.allclose(yr, _h_swish_ref(xr), atol=1e-6, rtol=1e-6), "ragged mismatch"

    print("KERNEL_OK")
</pallas_src>

<mosaic_0001>
module attributes {stable_mosaic.version = 11 : i64} {
  func.func @_h_swish_kernel(%arg0: i32, %arg1: memref<2x1024xf32, #tpu.memory_space<vmem>>, %arg2: memref<2x1024xf32, #tpu.memory_space<vmem>>) attributes {dimension_semantics = [#tpu.dimension_semantics<parallel>], iteration_bounds = array<i64: 1>, scalar_prefetch = 0 : i64, scratch_operands = 0 : i64, tpu.core_type = #tpu.core_type<tc>, window_params = [{transform_indices = @transform_0, window_bounds = array<i64: 2, 1024>}, {transform_indices = @transform_1, window_bounds = array<i64: 2, 1024>}]} {
    %c0 = arith.constant 0 : index
    %c0_0 = arith.constant 0 : index
    %0 = vector.load %arg1[%c0, %c0_0] : memref<2x1024xf32, #tpu.memory_space<vmem>>, vector<2x1024xf32>
    %cst = arith.constant 3.000000e+00 : f32
    %1 = vector.broadcast %cst : f32 to vector<2x1024xf32>
    %2 = arith.addf %0, %1 : vector<2x1024xf32>
    %cst_1 = arith.constant 0.000000e+00 : f32
    %cst_2 = arith.constant 6.000000e+00 : f32
    %3 = vector.broadcast %cst_1 : f32 to vector<2x1024xf32>
    %4 = arith.maximumf %3, %2 : vector<2x1024xf32>
    %5 = vector.broadcast %cst_2 : f32 to vector<2x1024xf32>
    %6 = arith.minimumf %5, %4 : vector<2x1024xf32>
    %cst_3 = arith.constant 0.166666672 : f32
    %7 = vector.broadcast %cst_3 : f32 to vector<2x1024xf32>
    %8 = arith.mulf %6, %7 : vector<2x1024xf32>
    %9 = arith.mulf %0, %8 : vector<2x1024xf32>
    %c0_4 = arith.constant 0 : index
    %c0_5 = arith.constant 0 : index
    %10 = vector.load %arg2[%c0_4, %c0_5] : memref<2x1024xf32, #tpu.memory_space<vmem>>, vector<2x1024xf32>
    tpu.vector_store %arg2[%c0_4, %c0_5], %9 {strides = array<i32>} : memref<2x1024xf32, #tpu.memory_space<vmem>>, vector<2x1024xf32>,
    return
  }
  func.func @transform_0(%arg0: i32) -> (i32, i32) {
    %c0_i32 = arith.constant 0 : i32
    %c0_i32_0 = arith.constant 0 : i32
    return %arg0, %c0_i32 : i32, i32
  }
  func.func @transform_1(%arg0: i32) -> (i32, i32) {
    %c0_i32 = arith.constant 0 : i32
    %c0_i32_0 = arith.constant 0 : i32
    return %arg0, %c0_i32 : i32, i32
  }
}

</mosaic_0001>

<llo_original>
// kernel: tpu_custom_call.1
$region0: #{tpu_custom_call.1}
  #allocation0 [shape = 'u32[]', space=smem, size = 0x4, offset = 0x4, fixed_abs, tag = 'smem constant byte address 0x4 - core index']
  #allocation1 [shape = 'u32[144,128]{1,0:T(1,128)}', space=vmem, size = 0x12000, scoped, tag = 'internal scratch']
  %s0 = inlined_call_operand.hbm [shape: f32[2,1024], index: 0, kind: input, shape index: {}]
  %s1 = inlined_call_operand.hbm [shape: f32[2,1024], index: 1, kind: output, shape index: {}]
  %s2 = sld [smem:[#allocation0]]
  $region18: #{tpu_custom_call.1} parent=0
    _
  %s4 = ssub.s32 1, %s2
  %s5 = scalar_select 0, %s4, %s2
  $region1: #{tpu_custom_call.1} parent=0
    #allocation2 [shape = 'u8[8192]{0}', space=vmem, size = 0x2000, scoped, tag = 'input window, operand 0, single buffered']
    #allocation3 [shape = 's32[1]{0}', space=sflag, size = 0x4, scoped, tag = 'scoped memory for tpu_custom_call.1']
    #allocation4 [shape = 's32[1]{0}', space=sflag, size = 0x4, scoped, tag = 'scoped memory for tpu_custom_call.1']
    #allocation5 [shape = 'u8[8192]{0}', space=vmem, size = 0x2000, scoped, tag = 'output window, operand 0, single buffered']
    %6 = vsyncpa [#allocation3], 0
    %7 = vsyncpa [#allocation4], 0
    // Predicated region
    $region2: #{tpu_custom_call.1} parent=1 // pred_check
      _
    $region3: #{tpu_custom_call.1} parent=1 // pred_check_branch
      %9 = sbr.rel (0) target = $region5
    $region4: #{tpu_custom_call.1} parent=1 // pred_region
      %s11 = ssub.s32 256, 256
      %12 = vsyncadd [#allocation3], %s11
      %s14 = sshll.u32 [#allocation2], 4
      %s15 = int_to_ptr.vmem [resolvable:$true] %s14
      %17 = dma.hbm_to_vmem [thread:$0]  %s0, 256, %s15, [#allocation3]
    $region5: #{tpu_custom_call.1} parent=1 // pred_fallthru
      _
    // Predicated region
    $region6: #{tpu_custom_call.1} parent=1 // pred_check
      _
    $region7: #{tpu_custom_call.1} parent=1 // pred_check_branch
      %19 = sbr.rel (0) target = $region9
    $region8: #{tpu_custom_call.1} parent=1 // pred_region
      %20 = dma.done [#allocation3], 256
    $region9: #{tpu_custom_call.1} parent=1 // pred_fallthru
      _
    %v21 = vld [vmem:[#allocation2] sm:$0xff]
    %v22 = vld [vmem:[#allocation2 + $0x8] sm:$0xff]
    %v23 = vadd.f32 %v21, 3.0
    %v24 = vadd.f32 %v22, 3.0
    %v25 = vmax.f32 %v23, 0.0
    %v26 = vmax.f32 %v24, 0.0
    %v27 = vmin.f32 %v25, 6.0
    %v28 = vmin.f32 %v26, 6.0
    %v29 = vmul.f32 %v27, 0.16666667
    %v30 = vmul.f32 %v28, 0.16666667
    %v31 = vmul.f32 %v21, %v29
    %v32 = vmul.f32 %v22, %v30
    %33 = vst [vmem:[#allocation5] sm:$0xff] %v31
    %34 = vst [vmem:[#allocation5 + $0x8] sm:$0xff] %v32
    // Predicated region
    $region10: #{tpu_custom_call.1} parent=1 // pred_check
      _
    $region11: #{tpu_custom_call.1} parent=1 // pred_check_branch
      %36 = sbr.rel (0) target = $region13
    $region12: #{tpu_custom_call.1} parent=1 // pred_region
      %s38 = ssub.s32 256, 256
      %39 = vsyncadd [#allocation4], %s38
      %s41 = sshll.u32 [#allocation5], 4
      %s42 = int_to_ptr.vmem [resolvable:$true] %s41
      %44 = dma.vmem_to_hbm [thread:$0]  %s42, 256, %s1, [#allocation4]
    $region13: #{tpu_custom_call.1} parent=1 // pred_fallthru
      _
    // Predicated region
    $region14: #{tpu_custom_call.1} parent=1 // pred_check
      _
    $region15: #{tpu_custom_call.1} parent=1 // pred_check_branch
      %46 = sbr.rel (0) target = $region17
    $region16: #{tpu_custom_call.1} parent=1 // pred_region
      %47 = dma.done [#allocation4], 256
    $region17: #{tpu_custom_call.1} parent=1 // pred_fallthru
      _
    %48 = vsyncpa [#allocation3], 1
    %49 = vsyncpa [#allocation4], 1

</llo_original>
